<compile_context>
chip_gen: v7x
topology: tpu7x:2x2x1
jax: 0.10.0
libtpu: 0.0.40
codegen_flags: <defaults>
</compile_context>

<pallas_src>
import functools
import math

import jax
import jax.numpy as jnp
from jax.experimental import pallas as pl
from jax.experimental.pallas import tpu as pltpu


def _round_up(x, m):
    return ((x + m - 1) // m) * m


def _vmem_cap_bytes():
    """Physical VMEM per TensorCore (128 MiB v5e/v6e, 64 MiB v7x)."""
    try:
        cap = getattr(pltpu.get_tpu_info(), "vmem_capacity_bytes", None)
        if cap:
            return int(cap)
    except Exception:
        pass
    return 64 << 20  # conservative fallback (v7x per-TC size)


# ------------------------------- kernels -----------------------------------


def _linear_kernel_full_k(x_ref, w_ref, b_ref, o_ref, *, compute_dtype):
    """Single K block: no accumulator scratch, no K-axis revisit."""
    x = x_ref[...]
    w = w_ref[...]
    if compute_dtype is not None:
        x = x.astype(compute_dtype)
        w = w.astype(compute_dtype)
    acc = jnp.dot(x, w, preferred_element_type=jnp.float32)
    o_ref[...] = (acc + b_ref[...].astype(jnp.float32)).astype(o_ref.dtype)


def _linear_kernel_tiled_k(x_ref, w_ref, b_ref, o_ref, acc_ref, *, compute_dtype):
    """K-tiled: f32 accumulator resident across the innermost K grid axis (P3)."""
    @pl.when(pl.program_id(2) == 0)
    def _():
        acc_ref[...] = jnp.zeros_like(acc_ref)

    x = x_ref[...]
    w = w_ref[...]
    if compute_dtype is not None:
        x = x.astype(compute_dtype)
        w = w.astype(compute_dtype)
    acc_ref[...] += jnp.dot(x, w, preferred_element_type=jnp.float32)

    @pl.when(pl.program_id(2) == pl.num_programs(2) - 1)
    def _():
        o_ref[...] = (
            acc_ref[...] + b_ref[...].astype(jnp.float32)
        ).astype(o_ref.dtype)


# ------------------------------- wrapper ------------------------------------


@functools.partial(
    jax.jit,
    static_argnames=("tile_m", "tile_n", "tile_k", "compute_dtype", "out_dtype"),
)
def linear_head(x, weight_t, bias, *, tile_m=512, tile_n=1024, tile_k=2048,
                compute_dtype="auto", out_dtype=None):
    """y = x @ weight_t + bias  (== nn.Linear forward with W = weight_t.T).

    x: [..., in_dim]; weight_t: [in_dim, out_dim]; bias: [out_dim].
    compute_dtype: MXU input dtype.  "auto" -> bf16 when x is f32 (cast happens
      in-kernel; pre-convert the weight outside the jit for best results).
    out_dtype: output dtype (default x.dtype); accumulation stays f32.
    """
    in_dim, out_dim = weight_t.shape
    lead_shape = x.shape[:-1]
    if out_dtype is None:
        out_dtype = x.dtype
    if isinstance(compute_dtype, str) and compute_dtype == "auto":
        compute_dtype = jnp.bfloat16 if x.dtype == jnp.float32 else None

    x2d = x.reshape(-1, in_dim)
    M = x2d.shape[0]

    xb = jnp.dtype(x2d.dtype).itemsize
    wb = jnp.dtype(weight_t.dtype).itemsize
    bb = jnp.dtype(bias.dtype).itemsize
    ob = jnp.dtype(out_dtype).itemsize
    cd_size = jnp.dtype(compute_dtype).itemsize if compute_dtype is not None else xb
    m_align = {4: 8, 2: 16, 1: 32}.get(cd_size, 8)  # native sublane packing

    cap = _vmem_cap_bytes()
    budget = (cap * 3) // 4  # ~48 MiB on v7x, ~96 MiB on v5e/v6e

    tm = min(tile_m, _round_up(M, m_align))
    tn = min(tile_n, _round_up(out_dim, 128))

    def _tile_bytes(tm_, tn_, tk_, multi_k):
        # Double buffering counted exactly once per stream.
        b = (2 * tm_ * tk_ * xb          # x tiles
             + 2 * tk_ * tn_ * wb        # weight tiles (dominant HBM stream)
             + 2 * tn_ * bb              # bias row
             + 2 * tm_ * tn_ * ob)       # output tiles
        if multi_k:
            b += tm_ * tn_ * 4           # f32 accumulator scratch
        return b

    # Prefer one full-K block: drops the accumulator scratch, the k==0 / k==last
    # branches, the per-step acc read-modify-write, and any K-padding of x.
    use_full_k = in_dim <= tile_k
    tk = in_dim
    if use_full_k:
        while _tile_bytes(tm, tn, tk, False) > budget and (tn > 128 or tm > m_align):
            if tn >= tm and tn > 128:
                tn = max(128, tn // 2)
            elif tm > m_align:
                tm = max(m_align, tm // 2)
            else:
                break
        if _tile_bytes(tm, tn, tk, False) > budget:
            use_full_k = False
    if not use_full_k:
        tk = min(tile_k, _round_up(in_dim, 128))
        while _tile_bytes(tm, tn, tk, True) > budget and (
                tk > 128 or tn > 128 or tm > m_align):
            if tk > 128:
                tk = max(128, tk // 2)
            elif tn > 128:
                tn = max(128, tn // 2)
            else:
                tm = max(m_align, tm // 2)

    # Padding: only K (zero-fill required for correctness when K is tiled) and
    # N (lane-dense, unmasked output stores).  M stays ragged: the last partial
    # M block is handled by Pallas boundary masking -> no full-slab jnp.pad(x).
    Kp = in_dim if use_full_k else _round_up(in_dim, tk)
    Np = _round_up(out_dim, tn)

    if Kp != in_dim:
        x2d = jnp.pad(x2d, ((0, 0), (0, Kp - in_dim)))
    w_p = weight_t
    if (Kp, Np) != (in_dim, out_dim):
        w_p = jnp.pad(weight_t, ((0, Kp - in_dim), (0, Np - out_dim)))
    b_p = bias if Np == out_dim else jnp.pad(bias, (0, Np - out_dim))
    bias2d = b_p.reshape(1, Np)

    need = _tile_bytes(tm, tn, tk, not use_full_k)
    vmem_limit = int(max(32 << 20, min(budget, need + (8 << 20))))

    cost = pl.CostEstimate(
        flops=2 * M * in_dim * out_dim,
        transcendentals=0,
        bytes_accessed=(M * in_dim * xb + in_dim * out_dim * wb
                        + out_dim * bb + M * out_dim * ob),
    )

    if use_full_k:
        kernel = functools.partial(_linear_kernel_full_k,
                                   compute_dtype=compute_dtype)
        grid = (pl.cdiv(M, tm), Np // tn)
        in_specs = [
            pl.BlockSpec((tm, Kp), lambda i, j: (i, 0)),   # x tile (full K)
            pl.BlockSpec((Kp, tn), lambda i, j: (0, j)),   # weight tile
            pl.BlockSpec((1, tn), lambda i, j: (0, j)),    # bias row
        ]
        out_specs = pl.BlockSpec((tm, tn), lambda i, j: (i, j))
        scratch_shapes = ()
        dim_sem = ("parallel", "parallel")
    else:
        kernel = functools.partial(_linear_kernel_tiled_k,
                                   compute_dtype=compute_dtype)
        grid = (pl.cdiv(M, tm), Np // tn, Kp // tk)
        in_specs = [
            pl.BlockSpec((tm, tk), lambda i, j, k: (i, k)),  # x tile
            # TODO(synk): add pipeline_mode=pl.Buffered(3) on the weight spec if
            # profiling shows exposed weight DMA (budget permitting).
            pl.BlockSpec((tk, tn), lambda i, j, k: (k, j)),  # weight tile
            pl.BlockSpec((1, tn), lambda i, j, k: (0, j)),   # bias row
        ]
        out_specs = pl.BlockSpec((tm, tn), lambda i, j, k: (i, j))
        scratch_shapes = (pltpu.VMEM((tm, tn), jnp.float32),)
        dim_sem = ("parallel", "parallel", "arbitrary")

    out = pl.pallas_call(
        kernel,
        out_shape=jax.ShapeDtypeStruct((M, Np), out_dtype),
        grid_spec=pltpu.PrefetchScalarGridSpec(
            num_scalar_prefetch=0,
            grid=grid,
            in_specs=in_specs,
            out_specs=out_specs,
            scratch_shapes=scratch_shapes,
        ),
        compiler_params=pltpu.CompilerParams(
            dimension_semantics=dim_sem,
            vmem_limit_bytes=vmem_limit,
        ),
        cost_estimate=cost,
    )(x2d, w_p, bias2d)

    if Np != out_dim:
        out = out[:, :out_dim]
    return out.reshape(*lead_shape, out_dim)


if __name__ == "__main__":
    key = jax.random.PRNGKey(0)
    k1, k2, k3, k4, k5, k6, k7, k8, k9 = jax.random.split(key, 9)

    # ---- Case 1: LinearHead demo shapes, pure f32 path (full-K kernel) ----
    batch, seq, in_dim, out_dim = 2, 8, 32, 16
    x = jax.random.normal(k1, (batch, seq, in_dim), dtype=jnp.float32)
    bound = 1.0 / math.sqrt(in_dim)
    # nn.Linear weight is (out_dim, in_dim); store transposed for the kernel.
    weight = jax.random.uniform(k2, (out_dim, in_dim), jnp.float32, -bound, bound)
    bias = jax.random.uniform(k3, (out_dim,), jnp.float32, -bound, bound)
    weight_t = weight.T  # (in_dim, out_dim)

    y = linear_head(x, weight_t, bias, compute_dtype=None)
    jax.block_until_ready(y)
    y_ref = x @ weight_t + bias
    assert y.shape == (batch, seq, out_dim)
    assert jnp.allclose(y, y_ref, atol=1e-4, rtol=1e-4)

    # ---- Case 2: ragged shapes, default bf16 compute path (weight pre-cast) ----
    b2, s2, d_in2, d_out2 = 3, 5, 40, 20   # M=15 (not /8), K=40, N=20 (<128)
    x2 = jax.random.normal(k4, (b2, s2, d_in2), dtype=jnp.float32)
    bound2 = 1.0 / math.sqrt(d_in2)
    w2 = jax.random.uniform(k5, (d_out2, d_in2), jnp.float32, -bound2, bound2)
    bias2 = jax.random.uniform(k6, (d_out2,), jnp.float32, -bound2, bound2)
    w2_t_bf16 = w2.T.astype(jnp.bfloat16)   # pre-convert once, outside the jit
    y2 = linear_head(x2, w2_t_bf16, bias2)  # compute_dtype="auto" -> bf16
    jax.block_until_ready(y2)
    x2r = x2.astype(jnp.bfloat16).astype(jnp.float32)
    w2r = w2_t_bf16.astype(jnp.float32)
    y2_ref = jnp.matmul(x2r, w2r, precision=jax.lax.Precision.HIGHEST) + bias2
    assert y2.shape == (b2, s2, d_out2)
    assert jnp.allclose(y2, y2_ref, atol=1e-3, rtol=1e-3)

    # ---- Case 3: force the K-tiled accumulator path (tile_k < in_dim) ----
    b3, s3, d_in3, d_out3 = 2, 8, 256, 128
    x3 = jax.random.normal(k7, (b3, s3, d_in3), dtype=jnp.float32)
    bound3 = 1.0 / math.sqrt(d_in3)
    w3 = jax.random.uniform(k8, (d_out3, d_in3), jnp.float32, -bound3, bound3)
    bias3 = jax.random.uniform(k9, (d_out3,), jnp.float32, -bound3, bound3)
    w3_t_bf16 = w3.T.astype(jnp.bfloat16)
    y3 = linear_head(x3, w3_t_bf16, bias3, tile_k=128)
    jax.block_until_ready(y3)
    x3r = x3.astype(jnp.bfloat16).astype(jnp.float32)
    w3r = w3_t_bf16.astype(jnp.float32)
    y3_ref = jnp.matmul(x3r, w3r, precision=jax.lax.Precision.HIGHEST) + bias3
    assert y3.shape == (b3, s3, d_out3)
    assert jnp.allclose(y3, y3_ref, atol=1e-3, rtol=1e-3)

    print("KERNEL_OK")
</pallas_src>

<mosaic_0001>
module attributes {stable_mosaic.version = 11 : i64} {
  func.func @_linear_kernel_full_k(%arg0: i32, %arg1: i32, %arg2: memref<16x32xf32, #tpu.memory_space<vmem>>, %arg3: memref<32x128xf32, #tpu.memory_space<vmem>>, %arg4: memref<1x128xf32, #tpu.memory_space<vmem>>, %arg5: memref<16x128xf32, #tpu.memory_space<vmem>>) attributes {dimension_semantics = [#tpu.dimension_semantics<parallel>, #tpu.dimension_semantics<parallel>], iteration_bounds = array<i64: 1, 1>, scalar_prefetch = 0 : i64, scratch_operands = 0 : i64, tpu.core_type = #tpu.core_type<tc>, window_params = [{transform_indices = @transform_0, window_bounds = array<i64: 16, 32>}, {transform_indices = @transform_1, window_bounds = array<i64: 32, 128>}, {transform_indices = @transform_2, window_bounds = array<i64: 1, 128>}, {transform_indices = @transform_3, window_bounds = array<i64: 16, 128>}]} {
    %c0 = arith.constant 0 : index
    %c0_0 = arith.constant 0 : index
    %0 = vector.load %arg2[%c0, %c0_0] : memref<16x32xf32, #tpu.memory_space<vmem>>, vector<16x32xf32>
    %c0_1 = arith.constant 0 : index
    %c0_2 = arith.constant 0 : index
    %1 = vector.load %arg3[%c0_1, %c0_2] : memref<32x128xf32, #tpu.memory_space<vmem>>, vector<32x128xf32>
    %cst = arith.constant dense<0.000000e+00> : vector<16x128xf32>
    %2 = tpu.matmul %0, %1, %cst {dimension_numbers = #tpu.dot_dimension_numbers<[1], [0], [0], [1], [0, 0, 1, 1], [], []>} : vector<16x32xf32>, vector<32x128xf32>, vector<16x128xf32> -> vector<16x128xf32>
    %c0_3 = arith.constant 0 : index
    %c0_4 = arith.constant 0 : index
    %3 = vector.load %arg4[%c0_3, %c0_4] : memref<1x128xf32, #tpu.memory_space<vmem>>, vector<1x128xf32>
    %4 = vector.broadcast %3 : vector<1x128xf32> to vector<16x128xf32>
    %5 = arith.addf %2, %4 : vector<16x128xf32>
    %c0_5 = arith.constant 0 : index
    %c0_6 = arith.constant 0 : index
    %6 = vector.load %arg5[%c0_5, %c0_6] : memref<16x128xf32, #tpu.memory_space<vmem>>, vector<16x128xf32>
    tpu.vector_store %arg5[%c0_5, %c0_6], %5 {strides = array<i32>} : memref<16x128xf32, #tpu.memory_space<vmem>>, vector<16x128xf32>,
    return
  }
  func.func @transform_0(%arg0: i32, %arg1: i32) -> (i32, i32) {
    %c0_i32 = arith.constant 0 : i32
    %c0_i32_0 = arith.constant 0 : i32
    return %arg0, %c0_i32 : i32, i32
  }
  func.func @transform_1(%arg0: i32, %arg1: i32) -> (i32, i32) {
    %c0_i32 = arith.constant 0 : i32
    %c0_i32_0 = arith.constant 0 : i32
    return %c0_i32, %arg1 : i32, i32
  }
  func.func @transform_2(%arg0: i32, %arg1: i32) -> (i32, i32) {
    %c0_i32 = arith.constant 0 : i32
    %c0_i32_0 = arith.constant 0 : i32
    return %c0_i32, %arg1 : i32, i32
  }
  func.func @transform_3(%arg0: i32, %arg1: i32) -> (i32, i32) {
    %c0_i32 = arith.constant 0 : i32
    return %arg0, %arg1 : i32, i32
  }
}

</mosaic_0001>

<llo_original>
// kernel: linear_head.1
$region0: #{linear_head.1}
  #allocation0 [shape = 'u32[]', space=smem, size = 0x4, offset = 0x4, fixed_abs, tag = 'smem constant byte address 0x4 - core index']
  #allocation1 [shape = 'u32[144,128]{1,0:T(1,128)}', space=vmem, size = 0x12000, scoped, tag = 'internal scratch']
  %s0 = inlined_call_operand.vmem [shape: f32[16,32], index: 0, kind: input, shape index: {}]
  %s1 = inlined_call_operand.vmem [shape: f32[32,128], index: 1, kind: input, shape index: {}]
  %s2 = inlined_call_operand.vmem [shape: f32[1,128], index: 2, kind: input, shape index: {}]
  %s3 = inlined_call_operand.vmem [shape: f32[16,128], index: 3, kind: output, shape index: {}]
  %s4 = sld [smem:[#allocation0]]
  $region22: #{linear_head.1} parent=0
    _
  %s6 = ssub.s32 1, %s4
  %s7 = scalar_select 0, %s6, %s4
  // Predicated region
  $region2: #{linear_head.1} parent=0 // pred_check
    _
  $region3: #{linear_head.1} parent=0 // pred_check_branch
    %9 = sbr.rel (0) target = $region5
  $region4: #{linear_head.1} parent=0 // pred_region
    _
  $region5: #{linear_head.1} parent=0 // pred_fallthru
    _
  // Predicated region
  $region6: #{linear_head.1} parent=0 // pred_check
    _
  $region7: #{linear_head.1} parent=0 // pred_check_branch
    %11 = sbr.rel (0) target = $region9
  $region8: #{linear_head.1} parent=0 // pred_region
    _
  $region9: #{linear_head.1} parent=0 // pred_fallthru
    _
  // Predicated region
  $region10: #{linear_head.1} parent=0 // pred_check
    _
  $region11: #{linear_head.1} parent=0 // pred_check_branch
    %13 = sbr.rel (0) target = $region13
  $region12: #{linear_head.1} parent=0 // pred_region
    _
  $region13: #{linear_head.1} parent=0 // pred_fallthru
    _
  %v14 = vld [vmem:[%s0] sm:$0xff]
  %v15 = vld [vmem:[%s0 + $0x8] sm:$0xff]
  %v16 = vld [vmem:[%s1] sm:$0xff]
  %v17 = vld [vmem:[%s1 + $0x8] sm:$0xff]
  %v18 = vld [vmem:[%s1 + $0x10] sm:$0xff]
  %v19 = vld [vmem:[%s1 + $0x18] sm:$0xff]
  %v20 = vld [vmem:[%s2] sm:$0x1]
  %v22 = vlaneseq
  %v23 = vshrl.u32 %v22, 7
  %v24 = vsub.s32 0, %v23
  %v25 = vrot.slane %v20, %v24
  %vm27 = vcmask 261120
  %v29 = vsel %vm27, %v14, 0
  %v32 = vsel %vm27, %v15, 0
  %34 = vmatprep.subr.mxu0 0.0
  %35 = vmatpush1.msra.mxu0 %v16
  %36 = vmatprep.subr.mxu0 0.0
  %37 = vmatpush1.msra.mxu0 %v17
  %38 = vmatprep.subr.mxu0 0.0
  %39 = vmatpush1.msra.mxu0 %v18
  %40 = vmatprep.subr.mxu0 0.0
  %41 = vmatpush1.msra.mxu0 %v19
  %42 = vmatprep.subr.mxu0 0.0
  %43 = vmatpush1.msra.mxu0 0.0
  %44 = vmatprep.subr.mxu0 0.0
  %45 = vmatpush1.msra.mxu0 0.0
  %46 = vmatprep.subr.mxu0 0.0
  %47 = vmatpush1.msra.mxu0 0.0
  %48 = vmatprep.subr.mxu0 0.0
  %49 = vmatpush1.msra.mxu0 0.0
  %50 = vmatprep.subr.mxu0 0.0
  %51 = vmatpush1.msra.mxu0 0.0
  %52 = vmatprep.subr.mxu0 0.0
  %53 = vmatpush1.msra.mxu0 0.0
  %54 = vmatprep.subr.mxu0 0.0
  %55 = vmatpush1.msra.mxu0 0.0
  %56 = vmatprep.subr.mxu0 0.0
  %57 = vmatpush1.msra.mxu0 0.0
  %58 = vmatprep.subr.mxu0 0.0
  %59 = vmatpush1.msra.mxu0 0.0
  %60 = vmatprep.subr.mxu0 0.0
  %61 = vmatpush1.msra.mxu0 0.0
  %62 = vmatprep.subr.mxu0 0.0
  %63 = vmatpush1.msra.mxu0 0.0
  %64 = vmatprep.subr.mxu0 0.0
  %65 = vmatpush1.msra.mxu0 0.0
  %66 = vmatprep.subr.mxu0 0.0
  %67 = vmatpush1.msra.mxu0 0.0
  %68 = vmatprep.subr.mxu0 0.0
  %69 = vmatpush1.msra.mxu0 0.0
  %70 = vmatprep.subr.mxu0 0.0
  %71 = vmatpush1.msra.mxu0 0.0
  %72 = vmatprep.subr.mxu0 0.0
  %73 = vmatpush1.msra.mxu0 0.0
  %74 = vmatprep.subr.mxu0 0.0
  %75 = vmatpush1.msra.mxu0 0.0
  %76 = vmatprep.subr.mxu0 0.0
  %77 = vmatpush1.msra.mxu0 0.0
  %78 = vmatprep.subr.mxu0 0.0
  %79 = vmatpush1.msra.mxu0 0.0
  %80 = vmatprep.subr.mxu0 0.0
  %81 = vmatpush1.msra.mxu0 0.0
  %82 = vmatprep.subr.mxu0 0.0
  %83 = vmatpush1.msra.mxu0 0.0
  %84 = vmatprep.subr.mxu0 0.0
  %85 = vmatpush1.msra.mxu0 0.0
  %86 = vmatprep.subr.mxu0 0.0
  %87 = vmatpush1.msra.mxu0 0.0
  %88 = vmatprep.subr.mxu0 0.0
  %89 = vmatpush1.msra.mxu0 0.0
  %90 = vmatprep.subr.mxu0 0.0
  %91 = vmatpush1.msra.mxu0 0.0
  %92 = vmatprep.subr.mxu0 0.0
  %93 = vmatpush1.msra.mxu0 0.0
  %94 = vmatprep.subr.mxu0 0.0
  %95 = vmatpush1.msra.mxu0 0.0
  %96 = vmatprep.subr.mxu0 0.0
  %97 = vmatpush1.msra.mxu0 0.0
  %98 = vmatprep.mubr.f32.mxu0 0.0
  %99 = vmatmul.mubr.f32.gmra.mrb[0].mxu0 %v29
  %v100 = vpop.f32.mrb[0].mxu0
  %v101 = vadd.f32 %v25, %v100
  %v102 = vpop.f32.mrb[0].mxu0
  %103 = vmatprep.mubr.f32.mxu0 0.0
  %104 = vmatmul.mubr.f32.gmra.mrb[0].mxu0 %v32
  %v105 = vpop.f32.mrb[0].mxu0
  %v106 = vadd.f32 %v25, %v105
  %v107 = vpop.f32.mrb[0].mxu0
  %108 = vdwg.mxu0
  %109 = vst [vmem:[%s3] sm:$0xff] %v101
  %110 = vst [vmem:[%s3 + $0x8] sm:$0xff] %v106
  // Predicated region
  $region14: #{linear_head.1} parent=0 // pred_check
    _
  $region15: #{linear_head.1} parent=0 // pred_check_branch
    %112 = sbr.rel (0) target = $region17
  $region16: #{linear_head.1} parent=0 // pred_region
    _
  $region17: #{linear_head.1} parent=0 // pred_fallthru
    _
  // Predicated region
  $region18: #{linear_head.1} parent=0 // pred_check
    _
  $region19: #{linear_head.1} parent=0 // pred_check_branch
    %114 = sbr.rel (0) target = $region21
  $region20: #{linear_head.1} parent=0 // pred_region
    _
  $region21: #{linear_head.1} parent=0 // pred_fallthru
    _

</llo_original>
